<compile_context>
chip_gen: v7x
topology: tpu7x:2x2x1
jax: 0.10.0
libtpu: 0.0.40
codegen_flags: <defaults>
</compile_context>

<pallas_src>
import math
from functools import partial

import numpy as np
import jax
import jax.numpy as jnp
from jax.experimental import pallas as pl
from jax.experimental.pallas import tpu as pltpu

HIDDEN = 8          # synthetic mip-processor hidden width
DIVIDE = 1.0        # RangeAdjuster(divide=1.0)
EPS = 1e-6

# Conservative per-kernel working-set budget: fits v5e's 16 MiB scoped default with
# headroom, v6e's 32 MiB scoped default, and v7x's 64 MiB physical VMEM.
_VMEM_BUDGET = 12 * 1024 * 1024
_VMEM_LIMIT = 48 * 1024 * 1024


def _mosaic(*sems):
    return pltpu.CompilerParams(dimension_semantics=sems,
                                vmem_limit_bytes=_VMEM_LIMIT)


def _pick_planes(total, elems_per_plane_pair, sublane_constrained=False):
    """How many (n,c) planes to batch per grid step, sized from the VMEM budget
    (in + out blocks, double-buffered).  Large for tiny images (kills per-step
    overhead), bounded for production images (no VMEM blowup)."""
    per = 2 * 4 * elems_per_plane_pair            # f32, x2 double buffering
    cap = max(int(_VMEM_BUDGET // max(per, 1)), 1)
    if cap >= total:
        return total
    bm = cap
    if sublane_constrained:                        # bm is a sublane dim of the block
        bm -= bm % 8
        while bm >= 8 and total % bm:
            bm -= 8
        return bm if bm >= 8 else total
    while total % bm:
        bm -= 1
    return max(bm, 1)


# ----------------------------------------------------------------------------
# Normalize (TissueNormalizer + folded RangeAdjuster)
# ----------------------------------------------------------------------------
def _normalize_kernel(x_ref, o_ref, *, scale):
    """Per-(n,c) plane, normalize nonzero pixels to mean 0 / std 1.
    Lane-dense (bm, H*W) slabs; shifted two-pass variance (data already resident)."""
    x = x_ref[...]
    if scale != 1.0:
        x = x * scale
    nz = x != 0.0
    cnt = jnp.maximum(jnp.sum(nz.astype(jnp.float32), axis=1, keepdims=True), 1.0)
    mean = jnp.sum(x, axis=1, keepdims=True) / cnt          # zeros contribute 0
    d = jnp.where(nz, x - mean, 0.0)
    var = jnp.sum(d * d, axis=1, keepdims=True) / cnt
    o_ref[...] = (d * jax.lax.rsqrt(var + EPS)).astype(o_ref.dtype)


def tissue_normalize(x_nchw):
    n, c, h, w = x_nchw.shape
    total, hw = n * c, h * w
    bm = _pick_planes(total, 2 * hw, sublane_constrained=True)
    out = pl.pallas_call(
        partial(_normalize_kernel, scale=float(1.0 / DIVIDE)),
        out_shape=jax.ShapeDtypeStruct((total, hw), x_nchw.dtype),
        grid=(total // bm,),
        in_specs=[pl.BlockSpec((bm, hw), lambda i: (i, 0))],
        out_specs=pl.BlockSpec((bm, hw), lambda i: (i, 0)),
        compiler_params=_mosaic("parallel"),
    )(x_nchw.reshape(total, hw))
    return out.reshape(n, c, h, w)


# ----------------------------------------------------------------------------
# Separable resampler (AvgPool2d(2) and bilinear 2x upsample)
# ----------------------------------------------------------------------------
def _resample_kernel(x_ref, a_ref, b_ref, o_ref):
    """out[p] = A @ x[p] @ B for a batch of planes.  Both contractions are single
    batched dot_generals (operator matrices broadcast over the plane batch), so
    the MXU sees one large matmul per step instead of bm tiny K=16 matmuls."""
    bm, h, w = x_ref.shape
    ho = a_ref.shape[0]
    wo = b_ref.shape[1]
    x = x_ref[...]
    b = jnp.broadcast_to(b_ref[...][None], (bm, w, wo))
    xw = jax.lax.dot_general(x, b, (((2,), (1,)), ((0,), (0,))),
                             preferred_element_type=jnp.float32)     # (bm, h, wo)
    a = jnp.broadcast_to(a_ref[...][None], (bm, ho, h))
    out = jax.lax.dot_general(a, xw, (((2,), (1,)), ((0,), (0,))),
                              preferred_element_type=jnp.float32)    # (bm, ho, wo)
    o_ref[...] = out.astype(o_ref.dtype)


def _resample(x_mhw, A, B):
    m, h, w = x_mhw.shape
    ho, wo = A.shape[0], B.shape[1]
    bm = _pick_planes(m, h * w + ho * wo)
    # TODO(synk): at production H the dense (ho,h)/(w,wo) operator matrices should be
    # band-tiled or replaced by a 2-tap stencil; at pyramid test sizes they are a few KiB.
    return pl.pallas_call(
        _resample_kernel,
        out_shape=jax.ShapeDtypeStruct((m, ho, wo), x_mhw.dtype),
        grid=(m // bm,),
        in_specs=[pl.BlockSpec((bm, h, w), lambda i: (i, 0, 0)),
                  pl.BlockSpec((ho, h), lambda i: (0, 0)),
                  pl.BlockSpec((w, wo), lambda i: (0, 0))],
        out_specs=pl.BlockSpec((bm, ho, wo), lambda i: (i, 0, 0)),
        compiler_params=_mosaic("parallel"),
    )(x_mhw, A, B)


def _pool_mat(n):
    m = np.zeros((n // 2, n), np.float32)
    idx = np.arange(n // 2)
    m[idx, 2 * idx] = 0.5
    m[idx, 2 * idx + 1] = 0.5
    return jnp.asarray(m)


def _up_mat(n, scale=1.0):
    """Bilinear 2x upsample matrix, align_corners=True (nn.UpsamplingBilinear2d)."""
    out = 2 * n
    i = np.arange(out)
    src = i * (n - 1) / (out - 1)
    i0 = np.floor(src).astype(np.int64)
    frac = (src - i0).astype(np.float32)
    i1 = np.minimum(i0 + 1, n - 1)
    m = np.zeros((out, n), np.float32)
    m[i, i0] += 1.0 - frac
    m[i, i1] += frac
    return jnp.asarray(m * scale)


def avg_pool2(x_nchw):
    """nn.AvgPool2d(2, count_include_pad=False) (no padding -> plain 2x2 mean)."""
    n, c, h, w = x_nchw.shape
    y = _resample(x_nchw.reshape(n * c, h, w), _pool_mat(h), _pool_mat(w).T)
    return y.reshape(n, c, h // 2, w // 2)


def upsample_residuals(res_nchw):
    """upsampler(res) * 2, residuals kept plane-major (N, 2, H, W); the *2 is folded
    into the row matrix, and no NCHW<->NHWC transposes are performed."""
    n, c, h, w = res_nchw.shape
    y = _resample(res_nchw.reshape(n * c, h, w), _up_mat(h, scale=2.0), _up_mat(w).T)
    return y.reshape(n, c, 2 * h, 2 * w)


# ----------------------------------------------------------------------------
# Synthetic mip processor: conv3x3(cin->hid) + tanh + conv3x3(hid->nout)
# ----------------------------------------------------------------------------
def _conv_proc_kernel(x_hbm, w1_ref, b1_ref, w2_ref, b2_ref, o_ref, xbuf, dma_sem,
                      *, H, W, TH):
    """VPU shift-add conv, row-tiled with a 2-px halo.

    The by-2 padded input lives in HBM; each step DMAs its (cin, TH+4, W+4) slab
    into VMEM scratch.  conv1 is evaluated on the (TH+2, W+2) grid and its halo
    rows/cols are zeroed with an iota mask, which *is* the zero-padded conv2
    input.  Taps are sliced at the point of use and folded straight into running
    accumulators; each hidden channel is consumed by conv2 immediately, so only
    ~3 spatial planes are ever live (no spills)."""
    cin = xbuf.shape[0]
    hid = b1_ref.shape[0]
    nout = o_ref.shape[1]
    TH2, W2 = TH + 2, W + 2

    nb = pl.program_id(0)
    r0 = pl.multiple_of(pl.program_id(1) * TH, TH)

    cp = pltpu.make_async_copy(x_hbm.at[nb, :, pl.ds(r0, TH + 4), :],
                               xbuf, dma_sem.at[0])
    cp.start()
    cp.wait()

    # 1-px halo mask for the (TH+2, W+2) hidden slab; rows are masked against the
    # *global* image extent so interior row tiles keep all rows.
    rr = jax.lax.broadcasted_iota(jnp.int32, (TH2, W2), 0) + (r0 - 1)
    cc = jax.lax.broadcasted_iota(jnp.int32, (TH2, W2), 1)
    interior = ((rr >= 0) & (rr < H) & (cc >= 1) & (cc <= W)).astype(jnp.float32)

    acc2 = [None] * nout
    for hc in range(hid):
        # conv1 (cin -> hidden channel hc) on the (TH+2, W+2) grid.
        acc1 = None
        for dy in range(3):
            for dx in range(3):
                for c in range(cin):
                    wv = w1_ref[((dy * 3 + dx) * cin + c) * hid + hc]
                    t = xbuf[c, dy:dy + TH2, dx:dx + W2] * wv
                    acc1 = t if acc1 is None else acc1 + t
        hplane = jnp.tanh(acc1 + b1_ref[hc]) * interior   # zeroed halo == conv2 padding
        # conv2 contribution of this hidden channel (valid conv over the padded slab).
        for dy in range(3):
            for dx in range(3):
                tap = hplane[dy:dy + TH, dx:dx + W]
                for oc in range(nout):
                    wv = w2_ref[((dy * 3 + dx) * hid + hc) * nout + oc]
                    t = tap * wv
                    acc2[oc] = t if acc2[oc] is None else acc2[oc] + t

    for oc in range(nout):
        o_ref[0, oc] = (acc2[oc] + b2_ref[oc]).astype(o_ref.dtype)


def _pick_row_tile(h, w, cin):
    """Largest row tile (multiple of 8, dividing h) whose working set fits the budget."""
    def step_bytes(th):
        xbuf = cin * (th + 4) * (w + 4)
        live = 3 * (th + 2) * (w + 2) + 2 * th * w      # hidden + conv1 acc + 2 out accs
        outb = 2 * 2 * th * w                           # nout=2 out block, double-buffered
        return 4 * (xbuf + live + outb)
    if step_bytes(h) <= _VMEM_BUDGET:
        return h
    th = max((h // 2) // 8 * 8, 8)
    while th >= 8:
        if h % th == 0 and step_bytes(th) <= _VMEM_BUDGET:
            return th
        th -= 8
    return h


def mip_processor_apply(sample_nchw, params):
    """Apply a synthetic mip processor: (N, 2, H, W) -> residual field (N, 2, H, W),
    plane-major (no transpose here; NHWC only at the API boundary)."""
    w1, b1, w2, b2 = params
    n, cin, h, w = sample_nchw.shape
    nout = w2.shape[-1]
    th = _pick_row_tile(h, w, cin)
    # TODO(synk): the by-2 zero padding is still a wrapper-side jnp.pad HBM pass; it
    # could be folded into the per-tile DMA + halo masking.
    xpad = jnp.pad(sample_nchw, ((0, 0), (0, 0), (2, 2), (2, 2)))
    assert xpad.shape == (n, cin, h + 4, w + 4)
    # TODO(synk): for W < 128 the (th, w) output block stores are lane-masked; a
    # lane-dense (nout, th*w) layout would need an in-kernel repack.
    out = pl.pallas_call(
        partial(_conv_proc_kernel, H=h, W=w, TH=th),
        out_shape=jax.ShapeDtypeStruct((n, nout, h, w), sample_nchw.dtype),
        grid=(n, h // th),
        in_specs=[
            pl.BlockSpec(memory_space=pl.ANY),                    # padded input (HBM)
            pl.BlockSpec(memory_space=pltpu.MemorySpace.SMEM),    # w1 (flattened)
            pl.BlockSpec(memory_space=pltpu.MemorySpace.SMEM),    # b1
            pl.BlockSpec(memory_space=pltpu.MemorySpace.SMEM),    # w2 (flattened)
            pl.BlockSpec(memory_space=pltpu.MemorySpace.SMEM),    # b2
        ],
        out_specs=pl.BlockSpec((1, nout, th, w), lambda i, r: (i, 0, r, 0)),
        scratch_shapes=[pltpu.VMEM((cin, th + 4, w + 4), jnp.float32),
                        pltpu.SemaphoreType.DMA((1,))],
        compiler_params=_mosaic("parallel", "parallel"),
    )(xpad, w1.reshape(-1), b1.reshape(-1), w2.reshape(-1), b2.reshape(-1))
    return out


# ----------------------------------------------------------------------------
# Warping helpers (plain JAX — data-dependent gather), plane-major residuals
# ----------------------------------------------------------------------------
def res_warp_img(img_nchw, res_nchw):
    """Bilinear warp of img by a pixel residual field, plane-major:
    res[:, 0] = dx, res[:, 1] = dy."""
    # TODO(synk): grid_sample-style gather has no clean Pallas TPU equivalent.
    n, c, h, w = img_nchw.shape
    yy, xx = jnp.meshgrid(jnp.arange(h, dtype=jnp.float32),
                          jnp.arange(w, dtype=jnp.float32), indexing="ij")

    def warp_one(img_c, r):
        sx = xx + r[0]
        sy = yy + r[1]
        x0 = jnp.floor(sx)
        y0 = jnp.floor(sy)
        wx = sx - x0
        wy = sy - y0
        x0i = jnp.clip(x0.astype(jnp.int32), 0, w - 1)
        x1i = jnp.clip(x0i + 1, 0, w - 1)
        y0i = jnp.clip(y0.astype(jnp.int32), 0, h - 1)
        y1i = jnp.clip(y0i + 1, 0, h - 1)
        g = lambda yi, xi: img_c[:, yi, xi]
        return (g(y0i, x0i) * (1 - wx) * (1 - wy) + g(y0i, x1i) * wx * (1 - wy)
                + g(y1i, x0i) * (1 - wx) * wy + g(y1i, x1i) * wx * wy)

    return jax.vmap(warp_one)(img_nchw, res_nchw)


def combine_residuals(a_nchw, b_nchw):
    """combine(a, b) = b + warp(a by b); residuals plane-major (N, 2, H, W)."""
    return b_nchw + res_warp_img(a_nchw, b_nchw)


# ----------------------------------------------------------------------------
# RollbackPyramid forward (glue in plain JAX, compute in the Pallas kernels)
# ----------------------------------------------------------------------------
def init_processor_params(mip, cin=2, hid=HIDDEN, nout=2):
    key = jax.random.PRNGKey(100 + mip)
    k1, k2, k3, k4 = jax.random.split(key, 4)
    w1 = 0.1 * jax.random.normal(k1, (3, 3, cin, hid), jnp.float32)
    b1 = 0.1 * jax.random.normal(k2, (hid,), jnp.float32)
    w2 = 0.1 * jax.random.normal(k3, (3, 3, hid, nout), jnp.float32)
    b2 = 0.1 * jax.random.normal(k4, (nout,), jnp.float32)
    return (w1, b1, w2, b2)


def rollback_pyramid_forward(raw_src_tgt, plastic_mask, mip_in,
                             processor_params, rollback=True):
    del plastic_mask                              # None in this synthetic setup
    src_tgt = tissue_normalize(raw_src_tgt)       # RangeAdjuster folded into the kernel

    ordered_mips = sorted([m for m in processor_params if m >= mip_in], reverse=True)
    high_mip = ordered_mips[0]

    downsampled = {mip_in: src_tgt}
    for mip in range(mip_in + 1, high_mip + 1):
        downsampled[mip] = avg_pool2(downsampled[mip - 1])

    aggregate_res = None                          # plane-major (N, 2, h_mip, w_mip)
    aggregate_res_mip = None
    residuals = {}
    for mip in ordered_mips:
        if aggregate_res is not None:
            while aggregate_res_mip > mip:
                aggregate_res = upsample_residuals(aggregate_res)
                aggregate_res_mip -= 1
            if rollback:
                tmp = aggregate_res
                for _ in range(mip_in, aggregate_res_mip):
                    tmp = upsample_residuals(tmp)
                src = res_warp_img(downsampled[mip_in][:, 0:1], tmp)
                for _ in range(mip_in, mip):
                    src = avg_pool2(src)
            else:
                src = res_warp_img(downsampled[mip][:, 0:1], aggregate_res)
        else:
            src = downsampled[high_mip][:, 0:1]
        tgt = downsampled[mip][:, 1:2]
        sample = jnp.concatenate([src, tgt], axis=1)
        residuals[mip] = mip_processor_apply(sample, processor_params[mip])
        if aggregate_res is None:
            # combine(res, zeros) == res: skip the zero-field warp entirely.
            aggregate_res = residuals[mip]
            aggregate_res_mip = mip
        else:
            aggregate_res = combine_residuals(residuals[mip], aggregate_res)

    while aggregate_res_mip > mip_in:
        aggregate_res = upsample_residuals(aggregate_res)
        aggregate_res_mip -= 1

    # NHWC only at the API boundary (module convention: residual field (N, H, W, 2)).
    return jnp.transpose(aggregate_res, (0, 2, 3, 1))


# ----------------------------------------------------------------------------
if __name__ == "__main__":
    N, C, H, W = 2, 2, 16, 16          # src + tgt stacked on the channel axis
    mip_in = 0
    processor_mips = (0, 1, 2)
    params = {m: init_processor_params(m) for m in processor_mips}

    raw_src_tgt = jax.random.normal(jax.random.PRNGKey(0), (N, C, H, W), jnp.float32)

    out = rollback_pyramid_forward(raw_src_tgt, None, mip_in, params, rollback=True)
    out = jax.block_until_ready(out)

    assert out.shape == (N, H, W, 2), out.shape
    assert bool(jnp.all(jnp.isfinite(out)))
    print("KERNEL_OK")
</pallas_src>

<mosaic_0001>
module attributes {stable_mosaic.version = 11 : i64} {
  func.func @_normalize_kernel(%arg0: i32, %arg1: memref<4x256xf32, #tpu.memory_space<vmem>>, %arg2: memref<4x256xf32, #tpu.memory_space<vmem>>) attributes {dimension_semantics = [#tpu.dimension_semantics<parallel>], iteration_bounds = array<i64: 1>, scalar_prefetch = 0 : i64, scratch_operands = 0 : i64, tpu.core_type = #tpu.core_type<tc>, window_params = [{transform_indices = @transform_0, window_bounds = array<i64: 4, 256>}, {transform_indices = @transform_1, window_bounds = array<i64: 4, 256>}]} {
    %c0 = arith.constant 0 : index
    %c0_0 = arith.constant 0 : index
    %0 = vector.load %arg1[%c0, %c0_0] : memref<4x256xf32, #tpu.memory_space<vmem>>, vector<4x256xf32>
    %cst = arith.constant 0.000000e+00 : f32
    %1 = vector.broadcast %cst : f32 to vector<4x256xf32>
    %2 = arith.cmpf one, %0, %1 : vector<4x256xf32>
    %3 = arith.extui %2 : vector<4x256xi1> to vector<4x256xi32>
    %4 = arith.sitofp %3 : vector<4x256xi32> to vector<4x256xf32>
    %cst_1 = arith.constant dense<0.000000e+00> : vector<4xf32>
    %5 = vector.multi_reduction <add>, %4, %cst_1 [1] : vector<4x256xf32> to vector<4xf32>
    %6 = vector.shape_cast %5 : vector<4xf32> to vector<4x1xf32>
    %cst_2 = arith.constant 1.000000e+00 : f32
    %7 = vector.broadcast %cst_2 : f32 to vector<4x1xf32>
    %8 = arith.maximumf %6, %7 : vector<4x1xf32>
    %cst_3 = arith.constant dense<0.000000e+00> : vector<4xf32>
    %9 = vector.multi_reduction <add>, %0, %cst_3 [1] : vector<4x256xf32> to vector<4xf32>
    %10 = vector.shape_cast %9 : vector<4xf32> to vector<4x1xf32>
    %11 = arith.divf %10, %8 : vector<4x1xf32>
    %12 = vector.broadcast %11 : vector<4x1xf32> to vector<4x256xf32>
    %13 = arith.subf %0, %12 : vector<4x256xf32>
    %cst_4 = arith.constant 0.000000e+00 : f32
    %14 = vector.broadcast %cst_4 : f32 to vector<4x256xf32>
    %15 = arith.select %2, %13, %14 : vector<4x256xi1>, vector<4x256xf32>
    %16 = arith.mulf %15, %15 : vector<4x256xf32>
    %cst_5 = arith.constant dense<0.000000e+00> : vector<4xf32>
    %17 = vector.multi_reduction <add>, %16, %cst_5 [1] : vector<4x256xf32> to vector<4xf32>
    %18 = vector.shape_cast %17 : vector<4xf32> to vector<4x1xf32>
    %19 = arith.divf %18, %8 : vector<4x1xf32>
    %cst_6 = arith.constant 9.99999997E-7 : f32
    %20 = vector.broadcast %cst_6 : f32 to vector<4x1xf32>
    %21 = arith.addf %19, %20 : vector<4x1xf32>
    %22 = math.rsqrt %21 : vector<4x1xf32>
    %23 = vector.broadcast %22 : vector<4x1xf32> to vector<4x256xf32>
    %24 = arith.mulf %15, %23 : vector<4x256xf32>
    %c0_7 = arith.constant 0 : index
    %c0_8 = arith.constant 0 : index
    %25 = vector.load %arg2[%c0_7, %c0_8] : memref<4x256xf32, #tpu.memory_space<vmem>>, vector<4x256xf32>
    tpu.vector_store %arg2[%c0_7, %c0_8], %24 {strides = array<i32>} : memref<4x256xf32, #tpu.memory_space<vmem>>, vector<4x256xf32>,
    return
  }
  func.func @transform_0(%arg0: i32) -> (i32, i32) {
    %c0_i32 = arith.constant 0 : i32
    %c0_i32_0 = arith.constant 0 : i32
    return %arg0, %c0_i32 : i32, i32
  }
  func.func @transform_1(%arg0: i32) -> (i32, i32) {
    %c0_i32 = arith.constant 0 : i32
    %c0_i32_0 = arith.constant 0 : i32
    return %arg0, %c0_i32 : i32, i32
  }
}

</mosaic_0001>

<llo_original>
// kernel: tpu_custom_call.1
$region0: #{tpu_custom_call.1}
  #allocation0 [shape = 'u32[]', space=smem, size = 0x4, offset = 0x4, fixed_abs, tag = 'smem constant byte address 0x4 - core index']
  #allocation1 [shape = 'u32[144,128]{1,0:T(1,128)}', space=vmem, size = 0x12000, scoped, tag = 'internal scratch']
  %s0 = inlined_call_operand.hbm [shape: f32[4,256], index: 0, kind: input, shape index: {}]
  %s1 = inlined_call_operand.hbm [shape: f32[4,256], index: 1, kind: output, shape index: {}]
  %s2 = sld [smem:[#allocation0]]
  $region18: #{tpu_custom_call.1} parent=0
    _
  %s4 = ssub.s32 1, %s2
  %s5 = scalar_select 0, %s4, %s2
  $region1: #{tpu_custom_call.1} parent=0
    #allocation2 [shape = 'u8[4096]{0}', space=vmem, size = 0x1000, scoped, tag = 'input window, operand 0, single buffered']
    #allocation3 [shape = 's32[1]{0}', space=sflag, size = 0x4, scoped, tag = 'scoped memory for tpu_custom_call.1']
    #allocation4 [shape = 's32[1]{0}', space=sflag, size = 0x4, scoped, tag = 'scoped memory for tpu_custom_call.1']
    #allocation5 [shape = 'u8[4096]{0}', space=vmem, size = 0x1000, scoped, tag = 'output window, operand 0, single buffered']
    %6 = vsyncpa [#allocation3], 0
    %7 = vsyncpa [#allocation4], 0
    // Predicated region
    $region2: #{tpu_custom_call.1} parent=1 // pred_check
      _
    $region3: #{tpu_custom_call.1} parent=1 // pred_check_branch
      %9 = sbr.rel (0) target = $region5
    $region4: #{tpu_custom_call.1} parent=1 // pred_region
      %s11 = ssub.s32 128, 128
      %12 = vsyncadd [#allocation3], %s11
      %s14 = sshll.u32 [#allocation2], 4
      %s15 = int_to_ptr.vmem [resolvable:$true] %s14
      %17 = dma.hbm_to_vmem [thread:$0]  %s0, 128, %s15, [#allocation3]
    $region5: #{tpu_custom_call.1} parent=1 // pred_fallthru
      _
    // Predicated region
    $region6: #{tpu_custom_call.1} parent=1 // pred_check
      _
    $region7: #{tpu_custom_call.1} parent=1 // pred_check_branch
      %19 = sbr.rel (0) target = $region9
    $region8: #{tpu_custom_call.1} parent=1 // pred_region
      %20 = dma.done [#allocation3], 128
    $region9: #{tpu_custom_call.1} parent=1 // pred_fallthru
      _
    %v21 = vld [vmem:[#allocation2] sm:$0xff]
    %vm22 = vcmp.ne.f32.partialorder %v21, 0.0
    %v23 = vsel %vm22, 1, 0
    %v24 = vcvt.s32.f32 %v23
    %v26 = vcombine.high %v24, %v24
    %vm28 = vcmask 1043456
    %v29 = vsel %vm28, %v24, 0.0
    %v30 = vsel %vm28, %v26, 0.0
    %v31 = vadd.f32 %v29, %v30
    %32 = vadd.xlane.f32.xlu0 %v31
    %v33 = vpop.xlane.xlu0 %32
    %v34 = vmax.f32 %v33, 1.0
    %v36 = vcombine.high %v21, %v21
    %v38 = vsel %vm28, %v21, 0.0
    %v39 = vsel %vm28, %v36, 0.0
    %v40 = vadd.f32 %v38, %v39
    %41 = vadd.xlane.f32.xlu0 %v40
    %v42 = vpop.xlane.xlu0 %41
    %v43 = vrcp.pop %v34
    %v44 = vmul.f32 %v42, %v43
    %v47 = vunpack.c.l.s4 839922192
    %v48 = vunpack.c.0.s8 %v47
    %v49 = vlaneseq
    %v50 = vshrl.u32 %v49, 7
    %v51 = vsub.s32 %v48, %v50
    %v52 = vrot.slane %v44, %v51
    %v54 = vsub.f32 %v21, %v52
    %v55 = vsel %vm22, %v54, 0.0
    %v56 = vmul.f32 %v55, %v55
    %v58 = vcombine.high %v56, %v56
    %v60 = vsel %vm28, %v56, 0.0
    %v61 = vsel %vm28, %v58, 0.0
    %v62 = vadd.f32 %v60, %v61
    %63 = vadd.xlane.f32.xlu0 %v62
    %v64 = vpop.xlane.xlu0 %63
    %v65 = vmul.f32 %v64, %v43
    %v66 = vadd.f32 %v65, 1e-06
    %v67 = vrsqrt.pop %v66
    %v70 = vunpack.c.l.s4 839922192
    %v71 = vunpack.c.0.s8 %v70
    %v72 = vlaneseq
    %v73 = vshrl.u32 %v72, 7
    %v74 = vsub.s32 %v71, %v73
    %v75 = vrot.slane %v67, %v74
    %v77 = vmul.f32 %v55, %v75
    %78 = vst [vmem:[#allocation5] sm:$0xff] %v77
    // Predicated region
    $region10: #{tpu_custom_call.1} parent=1 // pred_check
      _
    $region11: #{tpu_custom_call.1} parent=1 // pred_check_branch
      %80 = sbr.rel (0) target = $region13
    $region12: #{tpu_custom_call.1} parent=1 // pred_region
      %s82 = ssub.s32 128, 128
      %83 = vsyncadd [#allocation4], %s82
      %s85 = sshll.u32 [#allocation5], 4
      %s86 = int_to_ptr.vmem [resolvable:$true] %s85
      %88 = dma.vmem_to_hbm [thread:$0]  %s86, 128, %s1, [#allocation4]
    $region13: #{tpu_custom_call.1} parent=1 // pred_fallthru
      _
    // Predicated region
    $region14: #{tpu_custom_call.1} parent=1 // pred_check
      _
    $region15: #{tpu_custom_call.1} parent=1 // pred_check_branch
      %90 = sbr.rel (0) target = $region17
    $region16: #{tpu_custom_call.1} parent=1 // pred_region
      %91 = dma.done [#allocation4], 128
    $region17: #{tpu_custom_call.1} parent=1 // pred_fallthru
      _
    %92 = vsyncpa [#allocation3], 1
    %93 = vsyncpa [#allocation4], 1

</llo_original>
